<compile_context>
chip_gen: v6e
topology: v6e:2x2x1
jax: 0.10.0
libtpu: 0.0.40
codegen_flags: <defaults>
</compile_context>

<pallas_src>
import functools

import jax
import jax.numpy as jnp
from jax.experimental import pallas as pl
from jax.experimental.pallas import tpu as pltpu


def _sigmoid(z):
    return 1.0 / (1.0 + jnp.exp(-z))


# ----------------- pass 1: global avg-pool + channel-excitation MLP -----------------
def _cse_kernel(x_ref, w1_ref, b1_ref, w2_ref, b2_ref, gate_ref, acc_ref, *, inv_p):
    t = pl.program_id(0)

    @pl.when(t == 0)
    def _():
        acc_ref[...] = jnp.zeros_like(acc_ref)

    # Partial spatial sum for this tile: (N, C, TS) -> (N, C)
    acc_ref[...] += jnp.sum(x_ref[...].astype(jnp.float32), axis=-1)

    @pl.when(t == pl.num_programs(0) - 1)
    def _():
        mean = acc_ref[...] * inv_p                                           # (N, C)
        h = jnp.dot(mean, w1_ref[...], preferred_element_type=jnp.float32) + b1_ref[...]
        h = jnp.maximum(h, 0.0)                                               # ReLU
        z = jnp.dot(h, w2_ref[...], preferred_element_type=jnp.float32) + b2_ref[...]
        gate_ref[...] = _sigmoid(z).astype(gate_ref.dtype)                    # (N, C)


# ----------------- pass 2: fused spatial-SE (1x1 conv + sigmoid) + gating -----------------
def _scse_kernel(x_ref, cgate_ref, wsp_ref, o_ref):
    x = x_ref[...].astype(jnp.float32)                       # (N, C, TS)
    # 1x1 conv over channels (no bias): sum_c x[n,c,p] * w[c]  -> (N, 1, TS)
    s_lin = jnp.sum(x * wsp_ref[...], axis=1, keepdims=True)
    sgate = _sigmoid(s_lin)                                   # (N, 1, TS)
    # out = x*cgate + x*sgate == x * (cgate + sgate)
    out = x * (cgate_ref[...] + sgate)                        # (N, C, TS)
    o_ref[...] = out.astype(o_ref.dtype)


def _pick_spatial_tile(p):
    for ts in (2048, 1024, 512, 256, 128):
        if p % ts == 0:
            return ts
    return p


def scse_block(x_nchw, w1, b1, w2, b2, w_sp, *, spatial_tile=None):
    """SCSEBlock forward.

    x_nchw : (N, C, H, W)
    w1, b1 : Linear(C -> Cr), torch layout w1=(Cr, C), b1=(Cr,)
    w2, b2 : Linear(Cr -> C), torch layout w2=(C, Cr), b2=(C,)
    w_sp   : Conv2d(C -> 1, k=1, bias=False) weight, torch layout (1, C, 1, 1)
    """
    N, C, H, W = x_nchw.shape
    Cr = w1.shape[0]
    P = H * W
    TS = _pick_spatial_tile(P) if spatial_tile is None else spatial_tile
    assert P % TS == 0, "spatial tile must divide H*W"
    n_tiles = P // TS

    # Glue: flatten spatial (no transpose needed from NCHW), prep params.
    x3 = x_nchw.reshape(N, C, P).astype(jnp.float32)
    w1t = jnp.transpose(w1).astype(jnp.float32)       # (C, Cr)   y = x @ W.T + b
    b1r = b1.reshape(1, Cr).astype(jnp.float32)
    w2t = jnp.transpose(w2).astype(jnp.float32)       # (Cr, C)
    b2r = b2.reshape(1, C).astype(jnp.float32)
    wsp = w_sp.reshape(1, C, 1).astype(jnp.float32)   # channels on sublanes

    # ---- pass 1: channel gate (tiled spatial reduction, finalize via pl.when) ----
    cgate = pl.pallas_call(
        functools.partial(_cse_kernel, inv_p=1.0 / P),
        out_shape=jax.ShapeDtypeStruct((N, C), jnp.float32),
        grid=(n_tiles,),
        in_specs=[
            pl.BlockSpec((N, C, TS), lambda t: (0, 0, t)),
            pl.BlockSpec((C, Cr), lambda t: (0, 0)),
            pl.BlockSpec((1, Cr), lambda t: (0, 0)),
            pl.BlockSpec((Cr, C), lambda t: (0, 0)),
            pl.BlockSpec((1, C), lambda t: (0, 0)),
        ],
        out_specs=pl.BlockSpec((N, C), lambda t: (0, 0)),
        scratch_shapes=[pltpu.VMEM((N, C), jnp.float32)],
        compiler_params=pltpu.CompilerParams(dimension_semantics=("arbitrary",)),
    )(x3, w1t, b1r, w2t, b2r)

    cgate3 = cgate.reshape(N, C, 1)  # channels on sublanes for broadcast in pass 2

    # ---- pass 2: fused spatial SE + gating, lane-dense output tiles ----
    flops = 6 * N * C * P
    bytes_accessed = 2 * N * C * P * 4 + (N * C + C) * 4
    out3 = pl.pallas_call(
        _scse_kernel,
        out_shape=jax.ShapeDtypeStruct((N, C, P), x_nchw.dtype),
        grid=(n_tiles,),
        in_specs=[
            pl.BlockSpec((N, C, TS), lambda t: (0, 0, t)),
            pl.BlockSpec((N, C, 1), lambda t: (0, 0, 0)),
            pl.BlockSpec((1, C, 1), lambda t: (0, 0, 0)),
        ],
        out_specs=pl.BlockSpec((N, C, TS), lambda t: (0, 0, t)),
        compiler_params=pltpu.CompilerParams(dimension_semantics=("parallel",)),
        cost_estimate=pl.CostEstimate(flops=flops, transcendentals=N * P,
                                      bytes_accessed=bytes_accessed),
    )(x3, cgate3, wsp)

    return out3.reshape(N, C, H, W)


# ----------------- pure-JAX reference (mirrors the torch module) -----------------
def scse_reference(x, w1, b1, w2, b2, w_sp):
    N, C, H, W = x.shape
    chn = jnp.mean(x, axis=(2, 3))                                   # AdaptiveAvgPool2d(1)
    h = jnp.maximum(chn @ w1.T + b1, 0.0)                            # Linear + ReLU
    g = jax.nn.sigmoid(h @ w2.T + b2)                                # Linear + Sigmoid
    chn_se = x * g[:, :, None, None]
    s = jax.nn.sigmoid(jnp.einsum("nchw,c->nhw", x, w_sp.reshape(C)))  # 1x1 conv + Sigmoid
    spa_se = x * s[:, None, :, :]
    return chn_se + spa_se                                           # torch.add(chn_se, 1, spa_se)


if __name__ == "__main__":
    # SCSEBlock(channel=4, reduction=1) on a small input.
    N, C, H, W = 2, 4, 16, 16
    R = 1
    Cr = C // R

    key = jax.random.PRNGKey(0)
    kx, k1, k2, k3, k4, k5 = jax.random.split(key, 6)
    x = jax.random.normal(kx, (N, C, H, W), dtype=jnp.float32)

    # Deterministic Linear/Conv-style uniform init.
    bnd1 = 1.0 / jnp.sqrt(jnp.asarray(C, jnp.float32))
    bnd2 = 1.0 / jnp.sqrt(jnp.asarray(Cr, jnp.float32))
    w1 = jax.random.uniform(k1, (Cr, C), jnp.float32, -bnd1, bnd1)
    b1 = jax.random.uniform(k2, (Cr,), jnp.float32, -bnd1, bnd1)
    w2 = jax.random.uniform(k3, (C, Cr), jnp.float32, -bnd2, bnd2)
    b2 = jax.random.uniform(k4, (C,), jnp.float32, -bnd2, bnd2)
    w_sp = jax.random.uniform(k5, (1, C, 1, 1), jnp.float32, -bnd1, bnd1)

    # spatial_tile=128 -> 2 grid steps, exercising the tiled accumulator path.
    out = scse_block(x, w1, b1, w2, b2, w_sp, spatial_tile=128)
    out = jax.block_until_ready(out)

    ref = jax.block_until_ready(scse_reference(x, w1, b1, w2, b2, w_sp))
    assert out.shape == (N, C, H, W)
    assert jnp.allclose(out, ref, atol=1e-4, rtol=1e-4), "mismatch vs reference"

    print("KERNEL_OK")
</pallas_src>

<mosaic_0001>
module attributes {stable_mosaic.version = 11 : i64} {
  func.func @_cse_kernel(%arg0: i32, %arg1: memref<2x4x128xf32, #tpu.memory_space<vmem>>, %arg2: memref<4x4xf32, #tpu.memory_space<vmem>>, %arg3: memref<1x4xf32, #tpu.memory_space<vmem>>, %arg4: memref<4x4xf32, #tpu.memory_space<vmem>>, %arg5: memref<1x4xf32, #tpu.memory_space<vmem>>, %arg6: memref<2x4xf32, #tpu.memory_space<vmem>>, %arg7: memref<2x4xf32, #tpu.memory_space<vmem>>) attributes {dimension_semantics = [#tpu.dimension_semantics<arbitrary>], iteration_bounds = array<i64: 2>, scalar_prefetch = 0 : i64, scratch_operands = 1 : i64, tpu.core_type = #tpu.core_type<tc>, window_params = [{transform_indices = @transform_0, window_bounds = array<i64: 2, 4, 128>}, {pipeline_mode = #tpu.pipeline_mode<synchronous>, transform_indices = @transform_1, window_bounds = array<i64: 4, 4>}, {pipeline_mode = #tpu.pipeline_mode<synchronous>, transform_indices = @transform_2, window_bounds = array<i64: 1, 4>}, {pipeline_mode = #tpu.pipeline_mode<synchronous>, transform_indices = @transform_3, window_bounds = array<i64: 4, 4>}, {pipeline_mode = #tpu.pipeline_mode<synchronous>, transform_indices = @transform_4, window_bounds = array<i64: 1, 4>}, {pipeline_mode = #tpu.pipeline_mode<synchronous>, transform_indices = @transform_5, window_bounds = array<i64: 2, 4>}]} {
    %c0_i32 = arith.constant 0 : i32
    %0 = arith.cmpi eq, %arg0, %c0_i32 : i32
    %1 = arith.extui %0 : i1 to i32
    %c0_i32_0 = arith.constant 0 : i32
    %2 = arith.cmpi ne, %1, %c0_i32_0 : i32
    scf.if %2 {
      %cst_8 = arith.constant 0.000000e+00 : f32
      %11 = vector.broadcast %cst_8 : f32 to vector<2x4xf32>
      %c0_9 = arith.constant 0 : index
      %c0_10 = arith.constant 0 : index
      %12 = vector.load %arg7[%c0_9, %c0_10] : memref<2x4xf32, #tpu.memory_space<vmem>>, vector<2x4xf32>
      tpu.vector_store %arg7[%c0_9, %c0_10], %11 {strides = array<i32>} : memref<2x4xf32, #tpu.memory_space<vmem>>, vector<2x4xf32>,
    } else {
    }
    %c0 = arith.constant 0 : index
    %c0_1 = arith.constant 0 : index
    %3 = vector.load %arg7[%c0, %c0_1] : memref<2x4xf32, #tpu.memory_space<vmem>>, vector<2x4xf32>
    %c0_2 = arith.constant 0 : index
    %c0_3 = arith.constant 0 : index
    %c0_4 = arith.constant 0 : index
    %4 = vector.load %arg1[%c0_2, %c0_3, %c0_4] : memref<2x4x128xf32, #tpu.memory_space<vmem>>, vector<2x4x128xf32>
    %cst = arith.constant dense<0.000000e+00> : vector<2x4xf32>
    %5 = vector.multi_reduction <add>, %4, %cst [2] : vector<2x4x128xf32> to vector<2x4xf32>
    %6 = arith.addf %3, %5 : vector<2x4xf32>
    %c0_5 = arith.constant 0 : index
    %c0_6 = arith.constant 0 : index
    %7 = vector.load %arg7[%c0_5, %c0_6] : memref<2x4xf32, #tpu.memory_space<vmem>>, vector<2x4xf32>
    tpu.vector_store %arg7[%c0_5, %c0_6], %6 {strides = array<i32>} : memref<2x4xf32, #tpu.memory_space<vmem>>, vector<2x4xf32>,
    %c1_i32 = arith.constant 1 : i32
    %8 = arith.cmpi eq, %arg0, %c1_i32 : i32
    %9 = arith.extui %8 : i1 to i32
    %c0_i32_7 = arith.constant 0 : i32
    %10 = arith.cmpi ne, %9, %c0_i32_7 : i32
    scf.if %10 {
      %c0_8 = arith.constant 0 : index
      %c0_9 = arith.constant 0 : index
      %11 = vector.load %arg7[%c0_8, %c0_9] : memref<2x4xf32, #tpu.memory_space<vmem>>, vector<2x4xf32>
      %cst_10 = arith.constant 3.906250e-03 : f32
      %12 = vector.broadcast %cst_10 : f32 to vector<2x4xf32>
      %13 = arith.mulf %11, %12 : vector<2x4xf32>
      %c0_11 = arith.constant 0 : index
      %c0_12 = arith.constant 0 : index
      %14 = vector.load %arg2[%c0_11, %c0_12] : memref<4x4xf32, #tpu.memory_space<vmem>>, vector<4x4xf32>
      %cst_13 = arith.constant dense<0.000000e+00> : vector<2x4xf32>
      %15 = tpu.matmul %13, %14, %cst_13 {dimension_numbers = #tpu.dot_dimension_numbers<[1], [0], [0], [1], [0, 0, 1, 1], [], []>} : vector<2x4xf32>, vector<4x4xf32>, vector<2x4xf32> -> vector<2x4xf32>
      %c0_14 = arith.constant 0 : index
      %c0_15 = arith.constant 0 : index
      %16 = vector.load %arg3[%c0_14, %c0_15] : memref<1x4xf32, #tpu.memory_space<vmem>>, vector<1x4xf32>
      %17 = vector.broadcast %16 : vector<1x4xf32> to vector<2x4xf32>
      %18 = arith.addf %15, %17 : vector<2x4xf32>
      %cst_16 = arith.constant 0.000000e+00 : f32
      %19 = vector.broadcast %cst_16 : f32 to vector<2x4xf32>
      %20 = arith.maximumf %18, %19 : vector<2x4xf32>
      %c0_17 = arith.constant 0 : index
      %c0_18 = arith.constant 0 : index
      %21 = vector.load %arg4[%c0_17, %c0_18] : memref<4x4xf32, #tpu.memory_space<vmem>>, vector<4x4xf32>
      %cst_19 = arith.constant dense<0.000000e+00> : vector<2x4xf32>
      %22 = tpu.matmul %20, %21, %cst_19 {dimension_numbers = #tpu.dot_dimension_numbers<[1], [0], [0], [1], [0, 0, 1, 1], [], []>} : vector<2x4xf32>, vector<4x4xf32>, vector<2x4xf32> -> vector<2x4xf32>
      %c0_20 = arith.constant 0 : index
      %c0_21 = arith.constant 0 : index
      %23 = vector.load %arg5[%c0_20, %c0_21] : memref<1x4xf32, #tpu.memory_space<vmem>>, vector<1x4xf32>
      %24 = vector.broadcast %23 : vector<1x4xf32> to vector<2x4xf32>
      %25 = arith.addf %22, %24 : vector<2x4xf32>
      %cst_22 = arith.constant 0.000000e+00 : f32
      %26 = vector.broadcast %cst_22 : f32 to vector<2x4xf32>
      %27 = arith.subf %26, %25 : vector<2x4xf32>
      %28 = math.exp %27 : vector<2x4xf32>
      %cst_23 = arith.constant 1.000000e+00 : f32
      %29 = vector.broadcast %cst_23 : f32 to vector<2x4xf32>
      %30 = arith.addf %29, %28 : vector<2x4xf32>
      %cst_24 = arith.constant 1.000000e+00 : f32
      %31 = vector.broadcast %cst_24 : f32 to vector<2x4xf32>
      %32 = arith.divf %31, %30 : vector<2x4xf32>
      %c0_25 = arith.constant 0 : index
      %c0_26 = arith.constant 0 : index
      %33 = vector.load %arg6[%c0_25, %c0_26] : memref<2x4xf32, #tpu.memory_space<vmem>>, vector<2x4xf32>
      tpu.vector_store %arg6[%c0_25, %c0_26], %32 {strides = array<i32>} : memref<2x4xf32, #tpu.memory_space<vmem>>, vector<2x4xf32>,
    } else {
    }
    return
  }
  func.func @transform_0(%arg0: i32) -> (i32, i32, i32) {
    %c0_i32 = arith.constant 0 : i32
    %c0_i32_0 = arith.constant 0 : i32
    %c0_i32_1 = arith.constant 0 : i32
    return %c0_i32, %c0_i32_0, %arg0 : i32, i32, i32
  }
  func.func @transform_1(%arg0: i32) -> (i32, i32) {
    %c0_i32 = arith.constant 0 : i32
    %c0_i32_0 = arith.constant 0 : i32
    %c0_i32_1 = arith.constant 0 : i32
    return %c0_i32, %c0_i32_0 : i32, i32
  }
  func.func @transform_2(%arg0: i32) -> (i32, i32) {
    %c0_i32 = arith.constant 0 : i32
    %c0_i32_0 = arith.constant 0 : i32
    %c0_i32_1 = arith.constant 0 : i32
    return %c0_i32, %c0_i32_0 : i32, i32
  }
  func.func @transform_3(%arg0: i32) -> (i32, i32) {
    %c0_i32 = arith.constant 0 : i32
    %c0_i32_0 = arith.constant 0 : i32
    %c0_i32_1 = arith.constant 0 : i32
    return %c0_i32, %c0_i32_0 : i32, i32
  }
  func.func @transform_4(%arg0: i32) -> (i32, i32) {
    %c0_i32 = arith.constant 0 : i32
    %c0_i32_0 = arith.constant 0 : i32
    %c0_i32_1 = arith.constant 0 : i32
    return %c0_i32, %c0_i32_0 : i32, i32
  }
  func.func @transform_5(%arg0: i32) -> (i32, i32) {
    %c0_i32 = arith.constant 0 : i32
    %c0_i32_0 = arith.constant 0 : i32
    %c0_i32_1 = arith.constant 0 : i32
    return %c0_i32, %c0_i32_0 : i32, i32
  }
}

</mosaic_0001>

<llo_original>
// kernel: tpu_custom_call.1
$region0: #{tpu_custom_call.1}
  #allocation0 [shape = 'u32[]', space=smem, size = 0x4, offset = 0x4, fixed_abs, tag = 'smem constant byte address 0x4 - core index']
  #allocation1 [shape = 'u32[144,128]{1,0:T(1,128)}', space=vmem, size = 0x12000, scoped, tag = 'internal scratch']
  #allocation2 [shape = 'f32[2,4]{1,0:T(2,128)}', space=vmem, size = 0x400, scoped, tag = 'scratch operand']
  %s0 = inlined_call_operand.hbm [shape: f32[2,4,256], index: 0, kind: input, shape index: {}]
  %s1 = inlined_call_operand.hbm [shape: f32[4,4], index: 1, kind: input, shape index: {}]
  %s2 = inlined_call_operand.vmem [shape: f32[1,4], index: 2, kind: input, shape index: {}]
  %s3 = inlined_call_operand.vmem [shape: f32[4,4], index: 3, kind: input, shape index: {}]
  %s4 = inlined_call_operand.vmem [shape: f32[1,4], index: 4, kind: input, shape index: {}]
  %s5 = inlined_call_operand.hbm [shape: f32[2,4], index: 5, kind: output, shape index: {}]
  %s6 = sld [smem:[#allocation0]]
  $region69: #{tpu_custom_call.1} parent=0
    _
  %s8 = ssub.s32 1, %s6
  %s9 = scalar_select 0, %s8, %s6
  $region1: #{tpu_custom_call.1} parent=0
    #allocation3 [shape = 'u8[8192]{0}', space=vmem, size = 0x2000, scoped, tag = 'input window, operand 0']
    #allocation4 [shape = 's32[2]{0}', space=sflag, size = 0x8, scoped, tag = 'scoped memory for tpu_custom_call.1']
    #allocation5 [shape = 's32[2]{0}', space=sflag, size = 0x8, scoped, tag = 'scoped memory for tpu_custom_call.1']
    #allocation6 [shape = 'u8[2048]{0}', space=vmem, size = 0x800, scoped, tag = 'input window, operand 1, single buffered']
    #allocation7 [shape = 's32[1]{0}', space=sflag, size = 0x4, scoped, tag = 'scoped memory for tpu_custom_call.1']
    #allocation8 [shape = 'u8[1024]{0}', space=vmem, size = 0x400, scoped, tag = 'output window, operand 0, single buffered']
    %10 = vsyncpa [#allocation4], 0
    %s11 = scalar_lea.sflag [#allocation4], 1
    %12 = vsyncpa %s11, 0
    %13 = vsyncpa [#allocation7], 0
    %14 = vsyncpa [#allocation5], 0
    loop: start=0, step=1, limit=4
    $region2: #{tpu_custom_call.1} parent=1 // loop_pre_header
      _
    $region3: #{tpu_custom_call.1} parent=1 // loop_header
      %s16 = sphi 0, %s20
      %p17 = scmp.ge.s32.totalorder %s16, 4
      %s26 = sphi 0, %s28
      %s29 = sphi 0, %s26
      %s30 = sphi 0, %s29
      %s46 = sphi 0, %s30
      %s50 = sphi 0, %s50
      %s52 = sphi 0, %s50
      %s53 = sphi 0, %s52
      %s67 = sphi 0, %s53
      %s71 = sphi 0, %s71
      %s73 = sphi 0, %s71
      %s74 = sphi 0, %s73
      %s88 = sphi 0, %s74
      %s92 = sphi 0, %s92
      %s94 = sphi 0, %s92
      %s95 = sphi 0, %s94
      %s109 = sphi 0, %s95
      %s113 = sphi 0, %s113
      %s115 = sphi 0, %s113
      %s116 = sphi 0, %s115
      %s130 = sphi 0, %s116
      %s134 = sphi 0, %s134
      %s136 = sphi 0, %s134
      %s137 = sphi 0, %s136
      %s151 = sphi 0, %s137
    $region4: #{tpu_custom_call.1} parent=1 // loop_header_branch
      %19 = sbr.rel (%p17) target = $region8
    $region5: #{tpu_custom_call.1} parent=1 // loop_body
      %s21 = ssub.s32 %s16, 1
      %s22 = ssub.s32 %s16, 2
      %s23 = sadd.s32 %s16, 1
      %s24 = ssub.s32 %s16, %s23
      %p25 = scmp.eq.s32.totalorder %s24, 0
      %s27 = sadd.s32 %s26, 1
      %s28 = scalar_select %p25, %s26, %s27
      %p31 = pneg %p25
      %p32 = scmp.eq.s32.totalorder %s16, 1
      %p33 = por %p31, %p32
      %p34 = scmp.ne.s32.totalorder %s26, %s29
      %p35 = scmp.eq.s32.totalorder %s16, 0
      %p36 = por %p34, %p35
      %p37 = scmp.ne.s32.totalorder %s26, %s29
      %p38 = scmp.eq.s32.totalorder %s21, 1
      %p39 = por %p37, %p38
      %p40 = scmp.ne.s32.totalorder %s29, %s30
      %p41 = scmp.eq.s32.totalorder %s21, 0
      %p42 = por %p40, %p41
      %p43 = scmp.ne.s32.totalorder %s29, %s30
      %p44 = scmp.eq.s32.totalorder %s22, 1
      %p45 = por %p43, %p44
      %p47 = scmp.ne.s32.totalorder %s30, %s46
      %p48 = scmp.eq.s32.totalorder %s22, 0
      %p49 = por %p47, %p48
      %s51 = sadd.s32 %s50, 1
      %p54 = scmp.eq.s32.totalorder %s16, 1
      %p55 = scmp.ne.s32.totalorder %s50, %s52
      %p56 = scmp.eq.s32.totalorder %s16, 0
      %p57 = por %p55, %p56
      %p58 = scmp.ne.s32.totalorder %s50, %s52
      %p59 = scmp.eq.s32.totalorder %s21, 1
      %p60 = por %p58, %p59
      %p61 = scmp.ne.s32.totalorder %s52, %s53
      %p62 = scmp.eq.s32.totalorder %s21, 0
      %p63 = por %p61, %p62
      %p64 = scmp.ne.s32.totalorder %s52, %s53
      %p65 = scmp.eq.s32.totalorder %s22, 1
      %p66 = por %p64, %p65
      %p68 = scmp.ne.s32.totalorder %s53, %s67
      %p69 = scmp.eq.s32.totalorder %s22, 0
      %p70 = por %p68, %p69
      %s72 = sadd.s32 %s71, 1
      %p75 = scmp.eq.s32.totalorder %s16, 1
      %p76 = scmp.ne.s32.totalorder %s71, %s73
      %p77 = scmp.eq.s32.totalorder %s16, 0
      %p78 = por %p76, %p77
      %p79 = scmp.ne.s32.totalorder %s71, %s73
      %p80 = scmp.eq.s32.totalorder %s21, 1
      %p81 = por %p79, %p80
      %p82 = scmp.ne.s32.totalorder %s73, %s74
      %p83 = scmp.eq.s32.totalorder %s21, 0
      %p84 = por %p82, %p83
      %p85 = scmp.ne.s32.totalorder %s73, %s74
      %p86 = scmp.eq.s32.totalorder %s22, 1
      %p87 = por %p85, %p86
      %p89 = scmp.ne.s32.totalorder %s74, %s88
      %p90 = scmp.eq.s32.totalorder %s22, 0
      %p91 = por %p89, %p90
      %s93 = sadd.s32 %s92, 1
      %p96 = scmp.eq.s32.totalorder %s16, 1
      %p97 = scmp.ne.s32.totalorder %s92, %s94
      %p98 = scmp.eq.s32.totalorder %s16, 0
      %p99 = por %p97, %p98
      %p100 = scmp.ne.s32.totalorder %s92, %s94
      %p101 = scmp.eq.s32.totalorder %s21, 1
      %p102 = por %p100, %p101
      %p103 = scmp.ne.s32.totalorder %s94, %s95
      %p104 = scmp.eq.s32.totalorder %s21, 0
      %p105 = por %p103, %p104
      %p106 = scmp.ne.s32.totalorder %s94, %s95
      %p107 = scmp.eq.s32.totalorder %s22, 1
      %p108 = por %p106, %p107
      %p110 = scmp.ne.s32.totalorder %s95, %s109
      %p111 = scmp.eq.s32.totalorder %s22, 0
      %p112 = por %p110, %p111
      %s114 = sadd.s32 %s113, 1
      %p117 = scmp.eq.s32.totalorder %s16, 1
      %p118 = scmp.ne.s32.totalorder %s113, %s115
      %p119 = scmp.eq.s32.totalorder %s16, 0
      %p120 = por %p118, %p119
      %p121 = scmp.ne.s32.totalorder %s113, %s115
      %p122 = scmp.eq.s32.totalorder %s21, 1
      %p123 = por %p121, %p122
      %p124 = scmp.ne.s32.totalorder %s115, %s116
      %p125 = scmp.eq.s32.totalorder %s21, 0
      %p126 = por %p124, %p125
      %p127 = scmp.ne.s32.totalorder %s115, %s116
      %p128 = scmp.eq.s32.totalorder %s22, 1
      %p129 = por %p127, %p128
      %p131 = scmp.ne.s32.totalorder %s116, %s130
      %p132 = scmp.eq.s32.totalorder %s22, 0
      %p133 = por %p131, %p132
      %s135 = sadd.s32 %s134, 1
      %p138 = scmp.eq.s32.totalorder %s16, 1
      %p139 = scmp.ne.s32.totalorder %s134, %s136
      %p140 = scmp.eq.s32.totalorder %s16, 0
      %p141 = por %p139, %p140
      %p142 = scmp.ne.s32.totalorder %s134, %s136
      %p143 = scmp.eq.s32.totalorder %s21, 1
      %p144 = por %p142, %p143
      %p145 = scmp.ne.s32.totalorder %s136, %s137
      %p146 = scmp.eq.s32.totalorder %s21, 0
      %p147 = por %p145, %p146
      %p148 = scmp.ne.s32.totalorder %s136, %s137
      %p149 = scmp.eq.s32.totalorder %s22, 1
      %p150 = por %p148, %p149
      %p152 = scmp.ne.s32.totalorder %s137, %s151
      %p153 = scmp.eq.s32.totalorder %s22, 0
      %p154 = por %p152, %p153
      %p155 = scmp.le.s32.totalorder 1, %s16
      %p156 = scmp.lt.s32.totalorder %s16, 3
      %p157 = pnand %p155, %p156
      %p158 = pneg %p157
      // Predicated region
      $region9: #{tpu_custom_call.1} parent=5 // pred_check
        _
      $region10: #{tpu_custom_call.1} parent=5 // pred_check_branch
        %160 = sbr.rel (%p157) target = $region12
      $region11: #{tpu_custom_call.1} parent=5 // pred_region
        %s161 = ssub.s32 %s16, 1
        // Predicated region
        $region13: #{tpu_custom_call.1} parent=11 // pred_check
          %p162 = pneg %p63
        $region14: #{tpu_custom_call.1} parent=11 // pred_check_branch
          %164 = sbr.rel (%p162) target = $region16
        $region15: #{tpu_custom_call.1} parent=11 // pred_region
          %s166 = ssub.s32 64, 64
          %167 = vsyncadd [#allocation7], %s166
          %s169 = sshll.u32 [#allocation6], 4
          %s170 = int_to_ptr.vmem [resolvable:$true] %s169
          %172 = dma.hbm_to_vmem [thread:$0]  %s1, 64, %s170, [#allocation7]
        $region16: #{tpu_custom_call.1} parent=11 // pred_fallthru
          _
        // Predicated region
        $region17: #{tpu_custom_call.1} parent=11 // pred_check
          %p173 = pneg %p84
        $region18: #{tpu_custom_call.1} parent=11 // pred_check_branch
          %175 = sbr.rel (%p173) target = $region20
        $region19: #{tpu_custom_call.1} parent=11 // pred_region
          _
        $region20: #{tpu_custom_call.1} parent=11 // pred_fallthru
          _
        // Predicated region
        $region21: #{tpu_custom_call.1} parent=11 // pred_check
          %p176 = pneg %p105
        $region22: #{tpu_custom_call.1} parent=11 // pred_check_branch
          %178 = sbr.rel (%p176) target = $region24
        $region23: #{tpu_custom_call.1} parent=11 // pred_region
          _
        $region24: #{tpu_custom_call.1} parent=11 // pred_fallthru
          _
        // Predicated region
        $region25: #{tpu_custom_call.1} parent=11 // pred_check
          %p179 = pneg %p126
        $region26: #{tpu_custom_call.1} parent=11 // pred_check_branch
          %181 = sbr.rel (%p179) target = $region28
        $region27: #{tpu_custom_call.1} parent=11 // pred_region
          _
        $region28: #{tpu_custom_call.1} parent=11 // pred_fallthru
          _
      $region12: #{tpu_custom_call.1} parent=5 // pred_fallthru
        _
      %p182 = scmp.lt.s32.totalorder %s16, 2
      // Predicated region
      $region29: #{tpu_custom_call.1} parent=5 // pred_check
        %p183 = pneg %p182
      $region30: #{tpu_custom_call.1} parent=5 // pred_check_branch
        %185 = sbr.rel (%p183) target = $region32
      $region31: #{tpu_custom_call.1} parent=5 // pred_region
        // Predicated region
        $region33: #{tpu_custom_call.1} parent=31 // pred_check
          %p186 = pneg %p36
        $region34: #{tpu_custom_call.1} parent=31 // pred_check_branch
          %188 = sbr.rel (%p186) target = $region36
        $region35: #{tpu_custom_call.1} parent=31 // pred_region
          %s189 = sand.u32 %s26, 1
          %s190 = scalar_lea.sflag [#allocation4], %s189
          %s191 = sand.u32 %s26, 1
          %s192 = smul.addr %s191, 8
          %s193 = scalar_lea.vmem [#allocation3], %s192
          %s195 = ssub.s32 128, 128
          %196 = vsyncadd %s190, %s195
          %s197 = smul.addr %s16, 64
          %s198 = scalar_lea.hbm %s0, %s197
          %s199 = sshll.u32 %s193, 4
          %s200 = int_to_ptr.vmem [resolvable:$true] %s199
          %205 = dma.hbm_to_vmem [thread:$0]  %s198, 128, %s200, %s190, 128, 64, 4
        $region36: #{tpu_custom_call.1} parent=31 // pred_fallthru
          _
      $region32: #{tpu_custom_call.1} parent=5 // pred_fallthru
        _
      %p206 = scmp.le.s32.totalorder 1, %s16
      %p207 = scmp.lt.s32.totalorder %s16, 3
      %p208 = pnand %p206, %p207
      %p209 = pneg %p208
      // Predicated region
      $region37: #{tpu_custom_call.1} parent=5 // pred_check
        _
      $region38: #{tpu_custom_call.1} parent=5 // pred_check_branch
        %211 = sbr.rel (%p208) target = $region40
      $region39: #{tpu_custom_call.1} parent=5 // pred_region
        %s212 = ssub.s32 %s16, 1
        %s213 = sand.u32 %s29, 1
        %s214 = scalar_lea.sflag [#allocation4], %s213
        %s215 = sand.u32 %s29, 1
        %s216 = smul.addr %s215, 8
        %s217 = scalar_lea.vmem [#allocation3], %s216
        // Predicated region
        $region41: #{tpu_custom_call.1} parent=39 // pred_check
          %p218 = pneg %p42
        $region42: #{tpu_custom_call.1} parent=39 // pred_check_branch
          %220 = sbr.rel (%p218) target = $region44
        $region43: #{tpu_custom_call.1} parent=39 // pred_region
          %221 = dma.done %s214, 128
        $region44: #{tpu_custom_call.1} parent=39 // pred_fallthru
          _
        // Predicated region
        $region45: #{tpu_custom_call.1} parent=39 // pred_check
          %p222 = pneg %p63
        $region46: #{tpu_custom_call.1} parent=39 // pred_check_branch
          %224 = sbr.rel (%p222) target = $region48
        $region47: #{tpu_custom_call.1} parent=39 // pred_region
          %225 = dma.done [#allocation7], 64
        $region48: #{tpu_custom_call.1} parent=39 // pred_fallthru
          _
        %s226 = sand.u32 %s29, 1
        %s227 = scalar_lea.sflag [#allocation4], %s226
        %s228 = sand.u32 %s29, 1
        %s229 = smul.addr %s228, 8
        %s230 = scalar_lea.vmem [#allocation3], %s229
        %p231 = pneg %p42
        %p232 = pneg %p39
        %p233 = pneg %p63
        %p234 = pneg %p60
        %p235 = pneg %p84
        %p236 = pneg %p81
        %p237 = pneg %p105
        %p238 = pneg %p102
        %p239 = pneg %p126
        %p240 = pneg %p123
        %p241 = pneg %p147
        %p242 = pneg %p144
        %p243 = scmp.eq.s32.totalorder %s21, 0
        // Predicated region
        $region49: #{tpu_custom_call.1} parent=39 // pred_check
          %p244 = pneg %p243
        $region50: #{tpu_custom_call.1} parent=39 // pred_check_branch
          %246 = sbr.rel (%p244) target = $region52
        $region51: #{tpu_custom_call.1} parent=39 // pred_region
          %vm247 = vcmask 25600
          %248 = vst.msk [vmem:[#allocation2] sm:$0x3] %vm247, 0.0
        $region52: #{tpu_custom_call.1} parent=39 // pred_fallthru
          _
        %v249 = vld [vmem:[#allocation2] sm:$0x3]
        %v250 = vld [vmem:[%s217] sm:$0xf]
        %v251 = vld [vmem:[%s217 + $0x4] sm:$0xf]
        %vm252 = vcmask 1043456
        %v253 = vsel %vm252, %v250, 0.0
        %254 = vadd.xlane.f32.xlu0 %v253
        %v255 = vpop.xlane.xlu0 %254
        %v256 = vsel %vm252, %v251, 0.0
        %257 = vadd.xlane.f32.xlu0 %v256
        %v258 = vpop.xlane.xlu0 %257
        %v261 = vlaneseq
        %v262 = vand.u32 %v261, 127
        %v263 = vlaneseq
        %v264 = vshrl.u32 %v263, 7
        %v265 = vsub.s32 %v262, %v264
        %v266 = vrot.slane %v255, %v265
        %v267 = vlaneseq
        %v268 = vshrl.u32 %v267, 7
        %v269 = vsub.s32 %v262, %v268
        %v270 = vrot.slane %v258, %v269
        %vm271 = vcmask 1041409
        %v272 = vsel %vm271, %v270, %v266
        %v274 = vadd.f32 %v249, %v272
        %vm275 = vcmask 25600
        %276 = vst.msk [vmem:[#allocation2] sm:$0x3] %vm275, %v274
        %p277 = scmp.eq.s32.totalorder %s21, 1
        // Predicated region
        $region53: #{tpu_custom_call.1} parent=39 // pred_check
          %p278 = pneg %p277
        $region54: #{tpu_custom_call.1} parent=39 // pred_check_branch
          %280 = sbr.rel (%p278) target = $region56
        $region55: #{tpu_custom_call.1} parent=39 // pred_region
          %v281 = vld [vmem:[#allocation2] sm:$0x3]
          %v282 = vmul.f32 %v281, 0.00390625
          %v283 = vld [vmem:[#allocation6] sm:$0xf]
          %v284 = vld [vmem:[%s2] sm:$0x1]
          %v286 = vlaneseq
          %v287 = vshrl.u32 %v286, 7
          %v288 = vsub.s32 0, %v287
          %v289 = vrot.slane %v284, %v288
          %vm291 = vcmask 31744
          %v293 = vsel %vm291, %v282, 0
          %v296 = vsel %vm252, %v283, 0
          %298 = vmatprep.subr.mxu0 0.0
          %299 = vmatpush1.msra.mxu0 0.0
          %300 = vmatprep.subr.mxu0 0.0
          %301 = vmatpush1.msra.mxu0 0.0
          %302 = vmatprep.subr.mxu0 0.0
          %303 = vmatpush1.msra.mxu0 0.0
          %304 = vmatprep.subr.mxu0 0.0
          %305 = vmatpush1.msra.mxu0 0.0
          %306 = vmatprep.subr.mxu0 0.0
          %307 = vmatpush1.msra.mxu0 0.0
          %308 = vmatprep.subr.mxu0 0.0
          %309 = vmatpush1.msra.mxu0 0.0
          %310 = vmatprep.subr.mxu0 0.0
          %311 = vmatpush1.msra.mxu0 0.0
          %312 = vmatprep.subr.mxu0 0.0
          %313 = vmatpush1.msra.mxu0 0.0
          %314 = vmatprep.subr.mxu0 0.0
          %315 = vmatpush1.msra.mxu0 0.0
          %316 = vmatprep.subr.mxu0 0.0
          %317 = vmatpush1.msra.mxu0 0.0
          %318 = vmatprep.subr.mxu0 0.0
          %319 = vmatpush1.msra.mxu0 0.0
          %320 = vmatprep.subr.mxu0 0.0
          %321 = vmatpush1.msra.mxu0 0.0
          %322 = vmatprep.subr.mxu0 0.0
          %323 = vmatpush1.msra.mxu0 0.0
          %324 = vmatprep.subr.mxu0 0.0
          %325 = vmatpush1.msra.mxu0 0.0
          %326 = vmatprep.subr.mxu0 0.0
          %327 = vmatpush1.msra.mxu0 0.0
          %328 = vmatprep.subr.mxu0 0.0
          %329 = vmatpush1.msra.mxu0 %v296
          %330 = vmatprep.subr.mxu0 0.0
          %331 = vmatpush2.msra.mxu0 0.0
          %332 = vmatprep.subr.mxu0 0.0
          %333 = vmatpush2.msra.mxu0 0.0
          %334 = vmatprep.subr.mxu0 0.0
          %335 = vmatpush2.msra.mxu0 0.0
          %336 = vmatprep.subr.mxu0 0.0
          %337 = vmatpush2.msra.mxu0 0.0
          %338 = vmatprep.subr.mxu0 0.0
          %339 = vmatpush2.msra.mxu0 0.0
          %340 = vmatprep.subr.mxu0 0.0
          %341 = vmatpush2.msra.mxu0 0.0
          %342 = vmatprep.subr.mxu0 0.0
          %343 = vmatpush2.msra.mxu0 0.0
          %344 = vmatprep.subr.mxu0 0.0
          %345 = vmatpush2.msra.mxu0 0.0
          %346 = vmatprep.subr.mxu0 0.0
          %347 = vmatpush2.msra.mxu0 0.0
          %348 = vmatprep.subr.mxu0 0.0
          %349 = vmatpush2.msra.mxu0 0.0
          %350 = vmatprep.subr.mxu0 0.0
          %351 = vmatpush2.msra.mxu0 0.0
          %352 = vmatprep.subr.mxu0 0.0
          %353 = vmatpush2.msra.mxu0 0.0
          %354 = vmatprep.subr.mxu0 0.0
          %355 = vmatpush2.msra.mxu0 0.0
          %356 = vmatprep.subr.mxu0 0.0
          %357 = vmatpush2.msra.mxu0 0.0
          %358 = vmatprep.subr.mxu0 0.0
          %359 = vmatpush2.msra.mxu0 0.0
          %360 = vmatprep.subr.mxu0 0.0
          %361 = vmatpush2.msra.mxu0 0.0
          %362 = vmatprep.mubr.f32.mxu0 0.0
          %363 = vmatmul.mubr.f32.gmra.mxu0 %v293
          %v364 = vpop.f32.mrf.mxu0
          %v365 = vadd.f32 %v289, %v364
          %v366 = vpop.f32.mrf.mxu0
          %367 = vdwg.mxu0
          %v368 = vmax.f32 %v365, 0.0
          %v369 = vld [vmem:[%s3] sm:$0xf]
          %v370 = vld [vmem:[%s4] sm:$0x1]
          %v372 = vlaneseq
          %v373 = vshrl.u32 %v372, 7
          %v374 = vsub.s32 0, %v373
          %v375 = vrot.slane %v370, %v374
          %v378 = vsel %vm291, %v368, 0
          %v381 = vsel %vm252, %v369, 0
          %383 = vmatprep.subr.mxu0 0.0
          %384 = vmatpush1.msra.mxu0 0.0
          %385 = vmatprep.subr.mxu0 0.0
          %386 = vmatpush1.msra.mxu0 0.0
          %387 = vmatprep.subr.mxu0 0.0
          %388 = vmatpush1.msra.mxu0 0.0
          %389 = vmatprep.subr.mxu0 0.0
          %390 = vmatpush1.msra.mxu0 0.0
          %391 = vmatprep.subr.mxu0 0.0
          %392 = vmatpush1.msra.mxu0 0.0
          %393 = vmatprep.subr.mxu0 0.0
          %394 = vmatpush1.msra.mxu0 0.0
          %395 = vmatprep.subr.mxu0 0.0
          %396 = vmatpush1.msra.mxu0 0.0
          %397 = vmatprep.subr.mxu0 0.0
          %398 = vmatpush1.msra.mxu0 0.0
          %399 = vmatprep.subr.mxu0 0.0
          %400 = vmatpush1.msra.mxu0 0.0
          %401 = vmatprep.subr.mxu0 0.0
          %402 = vmatpush1.msra.mxu0 0.0
          %403 = vmatprep.subr.mxu0 0.0
          %404 = vmatpush1.msra.mxu0 0.0
          %405 = vmatprep.subr.mxu0 0.0
          %406 = vmatpush1.msra.mxu0 0.0
          %407 = vmatprep.subr.mxu0 0.0
          %408 = vmatpush1.msra.mxu0 0.0
          %409 = vmatprep.subr.mxu0 0.0
          %410 = vmatpush1.msra.mxu0 0.0
          %411 = vmatprep.subr.mxu0 0.0
          %412 = vmatpush1.msra.mxu0 0.0
          %413 = vmatprep.subr.mxu0 0.0
          %414 = vmatpush1.msra.mxu0 %v381
          %415 = vmatprep.subr.mxu0 0.0
          %416 = vmatpush2.msra.mxu0 0.0
          %417 = vmatprep.subr.mxu0 0.0
          %418 = vmatpush2.msra.mxu0 0.0
          %419 = vmatprep.subr.mxu0 0.0
          %420 = vmatpush2.msra.mxu0 0.0
          %421 = vmatprep.subr.mxu0 0.0
          %422 = vmatpush2.msra.mxu0 0.0
          %423 = vmatprep.subr.mxu0 0.0
          %424 = vmatpush2.msra.mxu0 0.0
          %425 = vmatprep.subr.mxu0 0.0
          %426 = vmatpush2.msra.mxu0 0.0
          %427 = vmatprep.subr.mxu0 0.0
          %428 = vmatpush2.msra.mxu0 0.0
          %429 = vmatprep.subr.mxu0 0.0
          %430 = vmatpush2.msra.mxu0 0.0
          %431 = vmatprep.subr.mxu0 0.0
          %432 = vmatpush2.msra.mxu0 0.0
          %433 = vmatprep.subr.mxu0 0.0
          %434 = vmatpush2.msra.mxu0 0.0
          %435 = vmatprep.subr.mxu0 0.0
          %436 = vmatpush2.msra.mxu0 0.0
          %437 = vmatprep.subr.mxu0 0.0
          %438 = vmatpush2.msra.mxu0 0.0
          %439 = vmatprep.subr.mxu0 0.0
          %440 = vmatpush2.msra.mxu0 0.0
          %441 = vmatprep.subr.mxu0 0.0
          %442 = vmatpush2.msra.mxu0 0.0
          %443 = vmatprep.subr.mxu0 0.0
          %444 = vmatpush2.msra.mxu0 0.0
          %445 = vmatprep.subr.mxu0 0.0
          %446 = vmatpush2.msra.mxu0 0.0
          %447 = vmatprep.mubr.f32.mxu0 0.0
          %448 = vmatmul.mubr.f32.gmra.mxu0 %v378
          %v449 = vpop.f32.mrf.mxu0
          %v450 = vadd.f32 %v375, %v449
          %v451 = vpop.f32.mrf.mxu0
          %452 = vdwg.mxu0
          %v453 = vsub.f32 0.0, %v450
          %v454 = vmul.f32 %v453, 1.442695
          %v455 = vpow.pop %v454
          %v456 = vadd.f32 %v455, 1.0
          %v457 = vrcp.pop %v456
          %v458 = vmul.f32 1.0, %v457
          %459 = vst.msk [vmem:[#allocation8] sm:$0x3] %vm275, %v458
        $region56: #{tpu_custom_call.1} parent=39 // pred_fallthru
          _
        // Predicated region
        $region57: #{tpu_custom_call.1} parent=39 // pred_check
          %p460 = pneg %p144
        $region58: #{tpu_custom_call.1} parent=39 // pred_check_branch
          %462 = sbr.rel (%p460) target = $region60
        $region59: #{tpu_custom_call.1} parent=39 // pred_region
          %s464 = ssub.s32 32, 32
          %465 = vsyncadd [#allocation5], %s464
          %s467 = sshll.u32 [#allocation8], 4
          %s468 = int_to_ptr.vmem [resolvable:$true] %s467
          %470 = dma.vmem_to_hbm [thread:$0]  %s468, 32, %s5, [#allocation5]
        $region60: #{tpu_custom_call.1} parent=39 // pred_fallthru
          _
        // Predicated region
        $region61: #{tpu_custom_call.1} parent=39 // pred_check
          %p471 = pneg %p144
        $region62: #{tpu_custom_call.1} parent=39 // pred_check_branch
          %473 = sbr.rel (%p471) target = $region64
        $region63: #{tpu_custom_call.1} parent=39 // pred_region
          %474 = dma.done [#allocation5], 32
        $region64: #{tpu_custom_call.1} parent=39 // pred_fallthru
          _
      $region40: #{tpu_custom_call.1} parent=5 // pred_fallthru
        _
      %p475 = scmp.le.s32.totalorder 2, %s16
      // Predicated region
      $region65: #{tpu_custom_call.1} parent=5 // pred_check
        %p476 = pneg %p475
      $region66: #{tpu_custom_call.1} parent=5 // pred_check_branch
        %478 = sbr.rel (%p476) target = $region68
      $region67: #{tpu_custom_call.1} parent=5 // pred_region
        %s479 = ssub.s32 %s16, 2
      $region68: #{tpu_custom_call.1} parent=5 // pred_fallthru
        _
    $region6: #{tpu_custom_call.1} parent=1 // loop_footer
      %s20 = sadd.s32 1, %s16
    $region7: #{tpu_custom_call.1} parent=1 // loop_footer_branch
      %15 = sbr.rel target = $region3
    $region8: #{tpu_custom_call.1} parent=1 // loop_exit
      _
    %480 = vsyncpa [#allocation4], 1
    %s481 = scalar_lea.sflag [#allocation4], 1
    %482 = vsyncpa %s481, 1
    %483 = vsyncpa [#allocation7], 1
    %484 = vsyncpa [#allocation5], 1
    %s485 = scalar_lea.sflag [#allocation5], 1
    %486 = vsyncpa %s485, 1

</llo_original>
